<compile_context>
chip_gen: v7x
topology: tpu7x:2x2x1
jax: 0.10.0
libtpu: 0.0.40
codegen_flags: <defaults>
</compile_context>

<pallas_src>
import jax
import jax.numpy as jnp
from jax import lax
from jax.experimental import pallas as pl
from jax.experimental.pallas import tpu as pltpu

_NEG = -3.4028235e38  # torch.max over pad_packed: excluded positions


def _round_up(x, m):
    return ((x + m - 1) // m) * m


# ---------------------------------------------------------------------------
# Row-tiled matmul kernels (embedding Linear + hoisted GRU input projections)
# ---------------------------------------------------------------------------

def _mm_kernel(x_ref, w_ref, o_ref):
    o_ref[...] = jnp.dot(x_ref[...], w_ref[...],
                         preferred_element_type=jnp.float32)


def _mm_bias_kernel(x_ref, w_ref, b_ref, o_ref):
    o_ref[...] = (jnp.dot(x_ref[...], w_ref[...],
                          preferred_element_type=jnp.float32) + b_ref[...])


def tiled_matmul(x, w, b=None, tm_target=512):
    """(N, K) @ (K, M) [+ b], row-tiled so big batches pipeline HBM<->VMEM."""
    N, K = x.shape
    M = w.shape[1]
    tm = tm_target if N >= tm_target else _round_up(N, 8)
    n_pad = _round_up(N, tm)
    if n_pad != N:
        x = jnp.pad(x, ((0, n_pad - N), (0, 0)))
    in_specs = [pl.BlockSpec((tm, K), lambda i: (i, 0)),
                pl.BlockSpec((K, M), lambda i: (0, 0))]
    args = [x, w]
    kernel = _mm_kernel
    if b is not None:
        in_specs.append(pl.BlockSpec((1, M), lambda i: (0, 0)))
        args.append(b)
        kernel = _mm_bias_kernel
    out = pl.pallas_call(
        kernel,
        out_shape=jax.ShapeDtypeStruct((n_pad, M), jnp.float32),
        grid=(n_pad // tm,),
        in_specs=in_specs,
        out_specs=pl.BlockSpec((tm, M), lambda i: (i, 0)),
        compiler_params=pltpu.CompilerParams(
            dimension_semantics=("parallel",)),
    )(*args)
    return out[:N] if n_pad != N else out


# ---------------------------------------------------------------------------
# Time-chunked, batch-tiled bidirectional GRU recurrence kernel
# ---------------------------------------------------------------------------

def _make_gru_rec_kernel(Tc, Hp, bidirectional, emit_max):
    unroll = True if Tc <= 16 else 4

    def kernel(*refs):
        it = iter(refs)
        len_ref = next(it)                                    # (Tb, 1) int32
        tmax_ref = next(it) if emit_max else None             # (1, 1) int32
        xp_f_ref = next(it)                                   # (Tc, Tb, 3Hp)
        xp_b_ref = next(it) if bidirectional else None
        whh_f_ref = next(it)                                  # (Hp, 3Hp)
        whh_b_ref = next(it) if bidirectional else None
        if emit_max:
            mo_f_ref = next(it)                               # (Tb, Hp)
            mo_b_ref = next(it) if bidirectional else None
        else:
            of_ref = next(it)                                 # (Tc, Tb, Hp)
            ob_ref = next(it) if bidirectional else None
        hf_ref = next(it)                                     # (Tb, Hp) scratch
        hb_ref = next(it) if bidirectional else None
        if emit_max:
            af_ref = next(it)
            ab_ref = next(it) if bidirectional else None

        t_pid = pl.program_id(1)
        nc = pl.num_programs(1)

        # init carried state at the first time chunk of each batch tile
        @pl.when(t_pid == 0)
        def _():
            hf_ref[...] = jnp.zeros_like(hf_ref)
            if bidirectional:
                hb_ref[...] = jnp.zeros_like(hb_ref)
            if emit_max:
                af_ref[...] = jnp.full_like(af_ref, _NEG)
                if bidirectional:
                    ab_ref[...] = jnp.full_like(ab_ref, _NEG)

        lens = len_ref[...]                                   # (Tb, 1)
        whh_f = whh_f_ref[...]
        whh_b = whh_b_ref[...] if bidirectional else None

        t0_f = t_pid * Tc                                     # fwd chunk start
        t0_b = (nc - 1 - t_pid) * Tc                          # bwd chunk start

        def cell(xp, h, whh):
            # fused gates: one recurrent (Tb,Hp)@(Hp,3Hp) dot; r/z/n are
            # lane-aligned slices (each Hp wide, multiple of 128).
            hp = jnp.dot(h, whh, preferred_element_type=jnp.float32)
            r = jax.nn.sigmoid(xp[:, 0:Hp] + hp[:, 0:Hp])
            z = jax.nn.sigmoid(xp[:, Hp:2 * Hp] + hp[:, Hp:2 * Hp])
            n = jnp.tanh(xp[:, 2 * Hp:3 * Hp] + r * hp[:, 2 * Hp:3 * Hp])
            return (1.0 - z) * n + z * h

        zero = jnp.zeros((), jnp.float32)
        carry0 = (hf_ref[...],
                  hb_ref[...] if bidirectional else zero,
                  af_ref[...] if emit_max else zero,
                  ab_ref[...] if (emit_max and bidirectional) else zero)

        def step(s, carry):
            h_f, h_b, a_f, a_b = carry
            mask_f = lens > (t0_f + s)
            h_f = cell(xp_f_ref[s], h_f, whh_f)
            if bidirectional:
                sb = Tc - 1 - s
                mask_b = lens > (t0_b + sb)
                h_b = cell(xp_b_ref[sb], h_b, whh_b)
            if emit_max:
                a_f = jnp.maximum(a_f, jnp.where(mask_f, h_f, _NEG))
                if bidirectional:
                    a_b = jnp.maximum(a_b, jnp.where(mask_b, h_b, _NEG))
            else:
                # lane-dense full-Hp stores, masked to 0 past valid length
                of_ref[s] = jnp.where(mask_f, h_f, 0.0)
                if bidirectional:
                    ob_ref[sb] = jnp.where(mask_b, h_b, 0.0)
            return (h_f, h_b, a_f, a_b)

        h_f, h_b, a_f, a_b = lax.fori_loop(0, Tc, step, carry0, unroll=unroll)

        # persist carried state for the next time chunk
        hf_ref[...] = h_f
        if bidirectional:
            hb_ref[...] = h_b
        if emit_max:
            af_ref[...] = a_f
            if bidirectional:
                ab_ref[...] = a_b

            @pl.when(t_pid == nc - 1)
            def _():
                # pad_packed semantics: rows shorter than max(length) also see
                # explicit zero padding inside the torch.max window.
                tmax = tmax_ref[...]                          # (1, 1)
                short = len_ref[...] < tmax                   # (Tb, 1)

                def fin(acc):
                    return jnp.where(short, jnp.maximum(acc, 0.0), acc)

                mo_f_ref[...] = fin(af_ref[...])
                if bidirectional:
                    mo_b_ref[...] = fin(ab_ref[...])

    return kernel


def gru_layer_pallas(x_tm, len_col, tmax_arr, wih_f, whh_f, wih_b=None,
                     whh_b=None, *, emit_max, time_chunk, batch_tile):
    Lp, Bp, Din = x_tm.shape
    Hp = whh_f.shape[0]
    bidir = wih_b is not None
    Tc, Tb = time_chunk, batch_tile
    nc, nb = Lp // Tc, Bp // Tb

    # hoisted input projections: one big pipelined matmul per direction,
    # OFF the serial recurrence chain.
    x_flat = x_tm.reshape(Lp * Bp, Din)
    xp_f = tiled_matmul(x_flat, wih_f).reshape(Lp, Bp, 3 * Hp)
    xp_b = (tiled_matmul(x_flat, wih_b).reshape(Lp, Bp, 3 * Hp)
            if bidir else None)

    kernel = _make_gru_rec_kernel(Tc, Hp, bidir, emit_max)

    in_specs = [pl.BlockSpec((Tb, 1), lambda b, i: (b, 0))]
    args = [len_col]
    if emit_max:
        in_specs.append(pl.BlockSpec((1, 1), lambda b, i: (0, 0)))
        args.append(tmax_arr)
    in_specs.append(pl.BlockSpec((Tc, Tb, 3 * Hp), lambda b, i: (i, b, 0)))
    args.append(xp_f)
    if bidir:
        # reverse direction consumes time chunks back-to-front
        in_specs.append(
            pl.BlockSpec((Tc, Tb, 3 * Hp), lambda b, i: (nc - 1 - i, b, 0)))
        args.append(xp_b)
    in_specs.append(pl.BlockSpec((Hp, 3 * Hp), lambda b, i: (0, 0)))
    args.append(whh_f)
    if bidir:
        in_specs.append(pl.BlockSpec((Hp, 3 * Hp), lambda b, i: (0, 0)))
        args.append(whh_b)

    if emit_max:
        out_shape = [jax.ShapeDtypeStruct((Bp, Hp), jnp.float32)]
        out_specs = [pl.BlockSpec((Tb, Hp), lambda b, i: (b, 0))]
        if bidir:
            out_shape.append(jax.ShapeDtypeStruct((Bp, Hp), jnp.float32))
            out_specs.append(pl.BlockSpec((Tb, Hp), lambda b, i: (b, 0)))
    else:
        out_shape = [jax.ShapeDtypeStruct((Lp, Bp, Hp), jnp.float32)]
        out_specs = [pl.BlockSpec((Tc, Tb, Hp), lambda b, i: (i, b, 0))]
        if bidir:
            out_shape.append(jax.ShapeDtypeStruct((Lp, Bp, Hp), jnp.float32))
            out_specs.append(
                pl.BlockSpec((Tc, Tb, Hp), lambda b, i: (nc - 1 - i, b, 0)))

    scratch = [pltpu.VMEM((Tb, Hp), jnp.float32)]              # h_f
    if bidir:
        scratch.append(pltpu.VMEM((Tb, Hp), jnp.float32))      # h_b
    if emit_max:
        scratch.append(pltpu.VMEM((Tb, Hp), jnp.float32))      # acc_f
        if bidir:
            scratch.append(pltpu.VMEM((Tb, Hp), jnp.float32))  # acc_b

    res = pl.pallas_call(
        kernel,
        out_shape=tuple(out_shape),
        grid=(nb, nc),
        in_specs=in_specs,
        out_specs=tuple(out_specs),
        scratch_shapes=scratch,
        compiler_params=pltpu.CompilerParams(
            dimension_semantics=("parallel", "arbitrary")),
    )(*args)
    if not isinstance(res, (tuple, list)):
        res = (res,)
    return tuple(res)


# ---------------------------------------------------------------------------
# Parameter setup + forward glue (plain JAX)
# ---------------------------------------------------------------------------

def _pack_fused(wih_t, whh_t, H, Hp, seg_raw, seg_pad, n_seg):
    """Build lane-aligned fused [r|pad|z|pad|n|pad] weights.

    wih_t: (n_seg*seg_raw, 3H) raw (transposed) input weights, gate order r,z,n
    whh_t: (H, 3H)             raw (transposed) recurrent weights
    Returns ((din_pad, 3*Hp), (Hp, 3*Hp)) with zero padding everywhere else.
    """
    wih_cols, whh_cols = [], []
    for g in range(3):
        wg = wih_t[:, g * H:(g + 1) * H]
        segs = []
        for s in range(n_seg):
            seg = wg[s * seg_raw:(s + 1) * seg_raw]
            segs.append(jnp.pad(seg, ((0, seg_pad - seg_raw), (0, Hp - H))))
        wih_cols.append(jnp.concatenate(segs, axis=0))
        whh_cols.append(jnp.pad(whh_t[:, g * H:(g + 1) * H],
                                ((0, Hp - H), (0, Hp - H))))
    return (jnp.concatenate(wih_cols, axis=1),
            jnp.concatenate(whh_cols, axis=1))


def init_params(key, vocab_size, embed_size, hidden_dim, num_layers,
                bidirectional):
    H = hidden_dim
    Hp = _round_up(H, 128)
    num_dir = 2 if bidirectional else 1
    keys = iter(jax.random.split(key, 2 + num_layers * num_dir * 2))
    params = {}
    if vocab_size != embed_size:
        bound = 1.0 / (vocab_size ** 0.5)
        w = jax.random.uniform(next(keys), (embed_size, vocab_size),
                               jnp.float32, -bound, bound)
        b = jax.random.uniform(next(keys), (1, embed_size),
                               jnp.float32, -bound, bound)
        params["embed_wt"] = jnp.transpose(w)                  # (V, E)
        params["embed_b"] = b
    else:
        params["embed_wt"] = None
        params["embed_b"] = None
        next(keys), next(keys)
    k = 1.0 / (hidden_dim ** 0.5)
    params["gru_raw"] = []   # (din, 3H)/(H, 3H) for the pure-JAX reference
    params["gru"] = []       # lane-aligned fused layout for the kernels
    for layer in range(num_layers):
        din_raw = embed_size if layer == 0 else H * num_dir
        if layer == 0:
            n_seg, seg_raw, seg_pad = 1, embed_size, embed_size
        else:
            n_seg, seg_raw, seg_pad = num_dir, H, Hp
        raw_p, packed_p = {}, {}
        for name in (["fwd", "bwd"] if bidirectional else ["fwd"]):
            # PyTorch stores weight_ih as (3H, din) in [r|z|n] order, no bias.
            w_ih = jax.random.uniform(next(keys), (3 * H, din_raw),
                                      jnp.float32, -k, k)
            w_hh = jax.random.uniform(next(keys), (3 * H, H),
                                      jnp.float32, -k, k)
            wih_t, whh_t = jnp.transpose(w_ih), jnp.transpose(w_hh)
            raw_p[name] = (wih_t, whh_t)
            packed_p[name] = _pack_fused(wih_t, whh_t, H, Hp,
                                         seg_raw, seg_pad, n_seg)
        params["gru_raw"].append(raw_p)
        params["gru"].append(packed_p)
    return params


def gru_forward(text, lengths, params, *, hidden_dim, num_layers,
                bidirectional, time_chunk=32, batch_tile=8):
    B, L, V = text.shape
    H = hidden_dim

    if params["embed_wt"] is not None:
        # TODO(synk): replace the one-hot (N,V)@(V,E) matmul with an
        # embedding-row gather for realistic vocab sizes.
        emb = tiled_matmul(text.reshape(B * L, V).astype(jnp.float32),
                           params["embed_wt"], params["embed_b"])
        x = emb.reshape(B, L, -1)
    else:
        x = text.astype(jnp.float32)

    Tc = min(time_chunk, L)
    Lp = _round_up(L, Tc)
    Tb = min(batch_tile, _round_up(B, 8))
    Bp = _round_up(B, Tb)

    x_tm = jnp.transpose(x, (1, 0, 2))                         # (L, B, E)
    x_tm = jnp.pad(x_tm, ((0, Lp - L), (0, Bp - B), (0, 0)))
    len_col = jnp.pad(lengths.astype(jnp.int32), (0, Bp - B)).reshape(Bp, 1)
    tmax_arr = jnp.max(lengths).astype(jnp.int32).reshape(1, 1)

    # Mask the layer-0 input beyond each row's length: with a bias-free GRU
    # and h0=0 this keeps the reverse direction's hidden state exactly zero
    # through the padded tail.  Layers >= 1 already emit masked outputs.
    t_idx = jnp.arange(Lp, dtype=jnp.int32)[:, None, None]
    x_tm = jnp.where(t_idx < len_col[None, :, :], x_tm, 0.0)

    layer_in = x_tm
    for layer in range(num_layers):
        last = layer == num_layers - 1
        p = params["gru"][layer]
        wih_f, whh_f = p["fwd"]
        wih_b, whh_b = p["bwd"] if bidirectional else (None, None)
        outs = gru_layer_pallas(layer_in, len_col, tmax_arr, wih_f, whh_f,
                                wih_b, whh_b, emit_max=last,
                                time_chunk=Tc, batch_tile=Tb)
        if last:
            if bidirectional:
                mo_f, mo_b = outs
                out = jnp.concatenate([mo_f[:, :H], mo_b[:, :H]], axis=-1)
            else:
                out = outs[0][:, :H]
            return out[:B]
        # lane-dense per-direction outputs; concat (padded, zero-lane) layout
        # feeds the next layer directly (its wih has zero rows there).
        layer_in = (jnp.concatenate(outs, axis=-1) if bidirectional
                    else outs[0])
        # TODO(synk): nn.GRU inter-layer dropout is train-time only; eval
        # semantics (identity) are implemented here.


# ---------------------------------------------------------------------------
# Pure-JAX reference (pack_padded semantics) for the correctness check
# ---------------------------------------------------------------------------

def reverse_padded(x_tm, lengths):
    L = x_tm.shape[0]
    t = jnp.arange(L, dtype=jnp.int32)[:, None]
    idx = lengths[None, :].astype(jnp.int32) - 1 - t
    valid = (idx >= 0)[:, :, None]
    idx_c = jnp.clip(idx, 0, L - 1)[:, :, None]
    gathered = jnp.take_along_axis(
        x_tm, jnp.broadcast_to(idx_c, x_tm.shape), axis=0)
    return jnp.where(valid, gathered, 0.0)


def _ref_gru_dir(x_tm, wih, whh, lengths):
    L, B, _ = x_tm.shape
    H = whh.shape[0]
    h = jnp.zeros((B, H), jnp.float32)
    outs = []
    for t in range(L):
        xp = x_tm[t] @ wih
        hp = h @ whh
        r = jax.nn.sigmoid(xp[:, :H] + hp[:, :H])
        z = jax.nn.sigmoid(xp[:, H:2 * H] + hp[:, H:2 * H])
        n = jnp.tanh(xp[:, 2 * H:] + r * hp[:, 2 * H:])
        h = (1.0 - z) * n + z * h
        outs.append(jnp.where((lengths > t)[:, None], h, 0.0))
    return jnp.stack(outs, axis=0)


def ref_forward(text, lengths, params, *, hidden_dim, num_layers,
                bidirectional):
    B, L, V = text.shape
    if params["embed_wt"] is not None:
        x = (text.reshape(B * L, V) @ params["embed_wt"]
             + params["embed_b"]).reshape(B, L, -1)
    else:
        x = text
    layer_in = jnp.transpose(x, (1, 0, 2))
    for layer in range(num_layers):
        wih_f, whh_f = params["gru_raw"][layer]["fwd"]
        out_f = _ref_gru_dir(layer_in, wih_f, whh_f, lengths)
        if bidirectional:
            wih_b, whh_b = params["gru_raw"][layer]["bwd"]
            x_rev = reverse_padded(layer_in, lengths)
            out_b = reverse_padded(
                _ref_gru_dir(x_rev, wih_b, whh_b, lengths), lengths)
            layer_in = jnp.concatenate([out_f, out_b], axis=-1)
        else:
            layer_in = out_f
    tmax = jnp.max(lengths)
    t = jnp.arange(L)[:, None, None]
    valid = t < lengths[None, :, None]
    within = t < tmax
    masked = jnp.where(valid, layer_in, jnp.where(within, 0.0, _NEG))
    return jnp.max(masked, axis=0)


# ---------------------------------------------------------------------------

if __name__ == "__main__":
    B, L = 4, 8               # batch (flattened captions), max sequence length
    VOCAB, EMBED, HIDDEN = 48, 32, 32
    NUM_LAYERS, BIDIR = 2, True

    key = jax.random.PRNGKey(0)
    k_tok, k_par = jax.random.split(key)

    tokens = jax.random.randint(k_tok, (B, L), 0, VOCAB)
    text = jax.nn.one_hot(tokens, VOCAB, dtype=jnp.float32)    # (B, L, V)
    lengths = jnp.array([8, 5, 3, 6], dtype=jnp.int32)         # (B,) all >= 1

    params = init_params(k_par, VOCAB, EMBED, HIDDEN, NUM_LAYERS, BIDIR)

    out = gru_forward(text, lengths, params, hidden_dim=HIDDEN,
                      num_layers=NUM_LAYERS, bidirectional=BIDIR,
                      time_chunk=4)          # 2 time chunks: exercises carry
    out = jax.block_until_ready(out)

    ref = ref_forward(text, lengths, params, hidden_dim=HIDDEN,
                      num_layers=NUM_LAYERS, bidirectional=BIDIR)

    assert out.shape == (B, HIDDEN * (2 if BIDIR else 1)), out.shape
    err = float(jnp.max(jnp.abs(out - ref)))
    assert err < 5e-2, f"max abs error {err}"
    print("KERNEL_OK")
</pallas_src>

<mosaic_0001>
module attributes {stable_mosaic.version = 11 : i64} {
  func.func @_mm_bias_kernel(%arg0: i32, %arg1: memref<32x48xf32, #tpu.memory_space<vmem>>, %arg2: memref<48x32xf32, #tpu.memory_space<vmem>>, %arg3: memref<1x32xf32, #tpu.memory_space<vmem>>, %arg4: memref<32x32xf32, #tpu.memory_space<vmem>>) attributes {dimension_semantics = [#tpu.dimension_semantics<parallel>], iteration_bounds = array<i64: 1>, scalar_prefetch = 0 : i64, scratch_operands = 0 : i64, tpu.core_type = #tpu.core_type<tc>, window_params = [{transform_indices = @transform_0, window_bounds = array<i64: 32, 48>}, {pipeline_mode = #tpu.pipeline_mode<synchronous>, transform_indices = @transform_1, window_bounds = array<i64: 48, 32>}, {pipeline_mode = #tpu.pipeline_mode<synchronous>, transform_indices = @transform_2, window_bounds = array<i64: 1, 32>}, {transform_indices = @transform_3, window_bounds = array<i64: 32, 32>}]} {
    %c0 = arith.constant 0 : index
    %c0_0 = arith.constant 0 : index
    %0 = vector.load %arg1[%c0, %c0_0] : memref<32x48xf32, #tpu.memory_space<vmem>>, vector<32x48xf32>
    %c0_1 = arith.constant 0 : index
    %c0_2 = arith.constant 0 : index
    %1 = vector.load %arg2[%c0_1, %c0_2] : memref<48x32xf32, #tpu.memory_space<vmem>>, vector<48x32xf32>
    %cst = arith.constant dense<0.000000e+00> : vector<32x32xf32>
    %2 = tpu.matmul %0, %1, %cst {dimension_numbers = #tpu.dot_dimension_numbers<[1], [0], [0], [1], [0, 0, 1, 1], [], []>} : vector<32x48xf32>, vector<48x32xf32>, vector<32x32xf32> -> vector<32x32xf32>
    %c0_3 = arith.constant 0 : index
    %c0_4 = arith.constant 0 : index
    %3 = vector.load %arg3[%c0_3, %c0_4] : memref<1x32xf32, #tpu.memory_space<vmem>>, vector<1x32xf32>
    %4 = vector.broadcast %3 : vector<1x32xf32> to vector<32x32xf32>
    %5 = arith.addf %2, %4 : vector<32x32xf32>
    %c0_5 = arith.constant 0 : index
    %c0_6 = arith.constant 0 : index
    %6 = vector.load %arg4[%c0_5, %c0_6] : memref<32x32xf32, #tpu.memory_space<vmem>>, vector<32x32xf32>
    tpu.vector_store %arg4[%c0_5, %c0_6], %5 {strides = array<i32>} : memref<32x32xf32, #tpu.memory_space<vmem>>, vector<32x32xf32>,
    return
  }
  func.func @transform_0(%arg0: i32) -> (i32, i32) {
    %c0_i32 = arith.constant 0 : i32
    %c0_i32_0 = arith.constant 0 : i32
    return %arg0, %c0_i32 : i32, i32
  }
  func.func @transform_1(%arg0: i32) -> (i32, i32) {
    %c0_i32 = arith.constant 0 : i32
    %c0_i32_0 = arith.constant 0 : i32
    %c0_i32_1 = arith.constant 0 : i32
    return %c0_i32, %c0_i32_0 : i32, i32
  }
  func.func @transform_2(%arg0: i32) -> (i32, i32) {
    %c0_i32 = arith.constant 0 : i32
    %c0_i32_0 = arith.constant 0 : i32
    %c0_i32_1 = arith.constant 0 : i32
    return %c0_i32, %c0_i32_0 : i32, i32
  }
  func.func @transform_3(%arg0: i32) -> (i32, i32) {
    %c0_i32 = arith.constant 0 : i32
    %c0_i32_0 = arith.constant 0 : i32
    return %arg0, %c0_i32 : i32, i32
  }
}

</mosaic_0001>

<llo_original>
// kernel: tpu_custom_call.1
$region0: #{tpu_custom_call.1}
  #allocation0 [shape = 'u32[]', space=smem, size = 0x4, offset = 0x4, fixed_abs, tag = 'smem constant byte address 0x4 - core index']
  #allocation1 [shape = 'u32[144,128]{1,0:T(1,128)}', space=vmem, size = 0x12000, scoped, tag = 'internal scratch']
  %s0 = inlined_call_operand.vmem [shape: f32[32,48], index: 0, kind: input, shape index: {}]
  %s1 = inlined_call_operand.vmem [shape: f32[48,32], index: 1, kind: input, shape index: {}]
  %s2 = inlined_call_operand.vmem [shape: f32[1,32], index: 2, kind: input, shape index: {}]
  %s3 = inlined_call_operand.hbm [shape: f32[32,32], index: 3, kind: output, shape index: {}]
  %s4 = sld [smem:[#allocation0]]
  $region22: #{tpu_custom_call.1} parent=0
    _
  %s6 = ssub.s32 1, %s4
  %s7 = scalar_select 0, %s6, %s4
  $region1: #{tpu_custom_call.1} parent=0
    #allocation2 [shape = 'u8[16384]{0}', space=vmem, size = 0x4000, scoped, tag = 'output window, operand 0, single buffered']
    #allocation3 [shape = 's32[1]{0}', space=sflag, size = 0x4, scoped, tag = 'scoped memory for tpu_custom_call.1']
    %8 = vsyncpa [#allocation3], 0
    // Predicated region
    $region2: #{tpu_custom_call.1} parent=1 // pred_check
      _
    $region3: #{tpu_custom_call.1} parent=1 // pred_check_branch
      %10 = sbr.rel (0) target = $region5
    $region4: #{tpu_custom_call.1} parent=1 // pred_region
      _
    $region5: #{tpu_custom_call.1} parent=1 // pred_fallthru
      _
    // Predicated region
    $region6: #{tpu_custom_call.1} parent=1 // pred_check
      _
    $region7: #{tpu_custom_call.1} parent=1 // pred_check_branch
      %12 = sbr.rel (0) target = $region9
    $region8: #{tpu_custom_call.1} parent=1 // pred_region
      _
    $region9: #{tpu_custom_call.1} parent=1 // pred_fallthru
      _
    // Predicated region
    $region10: #{tpu_custom_call.1} parent=1 // pred_check
      _
    $region11: #{tpu_custom_call.1} parent=1 // pred_check_branch
      %14 = sbr.rel (0) target = $region13
    $region12: #{tpu_custom_call.1} parent=1 // pred_region
      _
    $region13: #{tpu_custom_call.1} parent=1 // pred_fallthru
      _
    %v15 = vld [vmem:[%s0] sm:$0xff]
    %v16 = vld [vmem:[%s0 + $0x8] sm:$0xff]
    %v17 = vld [vmem:[%s0 + $0x10] sm:$0xff]
    %v18 = vld [vmem:[%s0 + $0x18] sm:$0xff]
    %v19 = vld [vmem:[%s1] sm:$0xff]
    %v20 = vld [vmem:[%s1 + $0x8] sm:$0xff]
    %v21 = vld [vmem:[%s1 + $0x10] sm:$0xff]
    %v22 = vld [vmem:[%s1 + $0x18] sm:$0xff]
    %v23 = vld [vmem:[%s1 + $0x20] sm:$0xff]
    %v24 = vld [vmem:[%s1 + $0x28] sm:$0xff]
    %v25 = vld [vmem:[%s2] sm:$0x1]
    %v27 = vlaneseq
    %v28 = vshrl.u32 %v27, 7
    %v29 = vsub.s32 0, %v28
    %v30 = vrot.slane %v25, %v29
    %vm32 = vcmask 392192
    %v34 = vsel %vm32, %v15, 0
    %v37 = vsel %vm32, %v16, 0
    %v40 = vsel %vm32, %v17, 0
    %v43 = vsel %vm32, %v18, 0
    %45 = vmatprep.subr.mxu0 0.0
    %46 = vmatpush1.msra.mxu0 %v19
    %47 = vmatprep.subr.mxu0 0.0
    %48 = vmatpush1.msra.mxu0 %v20
    %49 = vmatprep.subr.mxu0 0.0
    %50 = vmatpush1.msra.mxu0 %v21
    %51 = vmatprep.subr.mxu0 0.0
    %52 = vmatpush1.msra.mxu0 %v22
    %53 = vmatprep.subr.mxu0 0.0
    %54 = vmatpush1.msra.mxu0 %v23
    %55 = vmatprep.subr.mxu0 0.0
    %56 = vmatpush1.msra.mxu0 %v24
    %57 = vmatprep.subr.mxu0 0.0
    %58 = vmatpush1.msra.mxu0 0.0
    %59 = vmatprep.subr.mxu0 0.0
    %60 = vmatpush1.msra.mxu0 0.0
    %61 = vmatprep.subr.mxu0 0.0
    %62 = vmatpush1.msra.mxu0 0.0
    %63 = vmatprep.subr.mxu0 0.0
    %64 = vmatpush1.msra.mxu0 0.0
    %65 = vmatprep.subr.mxu0 0.0
    %66 = vmatpush1.msra.mxu0 0.0
    %67 = vmatprep.subr.mxu0 0.0
    %68 = vmatpush1.msra.mxu0 0.0
    %69 = vmatprep.subr.mxu0 0.0
    %70 = vmatpush1.msra.mxu0 0.0
    %71 = vmatprep.subr.mxu0 0.0
    %72 = vmatpush1.msra.mxu0 0.0
    %73 = vmatprep.subr.mxu0 0.0
    %74 = vmatpush1.msra.mxu0 0.0
    %75 = vmatprep.subr.mxu0 0.0
    %76 = vmatpush1.msra.mxu0 0.0
    %77 = vmatprep.subr.mxu0 0.0
    %78 = vmatpush1.msra.mxu0 0.0
    %79 = vmatprep.subr.mxu0 0.0
    %80 = vmatpush1.msra.mxu0 0.0
    %81 = vmatprep.subr.mxu0 0.0
    %82 = vmatpush1.msra.mxu0 0.0
    %83 = vmatprep.subr.mxu0 0.0
    %84 = vmatpush1.msra.mxu0 0.0
    %85 = vmatprep.subr.mxu0 0.0
    %86 = vmatpush1.msra.mxu0 0.0
    %87 = vmatprep.subr.mxu0 0.0
    %88 = vmatpush1.msra.mxu0 0.0
    %89 = vmatprep.subr.mxu0 0.0
    %90 = vmatpush1.msra.mxu0 0.0
    %91 = vmatprep.subr.mxu0 0.0
    %92 = vmatpush1.msra.mxu0 0.0
    %93 = vmatprep.subr.mxu0 0.0
    %94 = vmatpush1.msra.mxu0 0.0
    %95 = vmatprep.subr.mxu0 0.0
    %96 = vmatpush1.msra.mxu0 0.0
    %97 = vmatprep.subr.mxu0 0.0
    %98 = vmatpush1.msra.mxu0 0.0
    %99 = vmatprep.subr.mxu0 0.0
    %100 = vmatpush1.msra.mxu0 0.0
    %101 = vmatprep.subr.mxu0 0.0
    %102 = vmatpush1.msra.mxu0 0.0
    %103 = vmatprep.subr.mxu0 0.0
    %104 = vmatpush1.msra.mxu0 0.0
    %105 = vmatprep.subr.mxu0 0.0
    %106 = vmatpush1.msra.mxu0 0.0
    %107 = vmatprep.subr.mxu0 0.0
    %108 = vmatpush1.msra.mxu0 0.0
    %109 = vmatprep.mubr.f32.mxu0 0.0
    %110 = vmatmul.mubr.f32.gmra.mrb[0].mxu0 %v34
    %v111 = vpop.f32.mrb[0].mxu0
    %v112 = vadd.f32 %v30, %v111
    %v113 = vpop.f32.mrb[0].mxu0
    %114 = vmatprep.mubr.f32.mxu0 0.0
    %115 = vmatmul.mubr.f32.gmra.mrb[0].mxu0 %v37
    %v116 = vpop.f32.mrb[0].mxu0
    %v117 = vadd.f32 %v30, %v116
    %v118 = vpop.f32.mrb[0].mxu0
    %119 = vmatprep.mubr.f32.mxu0 0.0
    %120 = vmatmul.mubr.f32.gmra.mrb[0].mxu0 %v40
    %v121 = vpop.f32.mrb[0].mxu0
    %v122 = vadd.f32 %v30, %v121
    %v123 = vpop.f32.mrb[0].mxu0
    %124 = vmatprep.mubr.f32.mxu0 0.0
    %125 = vmatmul.mubr.f32.gmra.mrb[0].mxu0 %v43
    %v126 = vpop.f32.mrb[0].mxu0
    %v127 = vadd.f32 %v30, %v126
    %v128 = vpop.f32.mrb[0].mxu0
    %129 = vdwg.mxu0
    %vm130 = vcmask 261120
    %131 = vst.msk [vmem:[#allocation2] sm:$0xff] %vm130, %v112
    %132 = vst.msk [vmem:[#allocation2 + $0x8] sm:$0xff] %vm130, %v117
    %133 = vst.msk [vmem:[#allocation2 + $0x10] sm:$0xff] %vm130, %v122
    %134 = vst.msk [vmem:[#allocation2 + $0x18] sm:$0xff] %vm130, %v127
    // Predicated region
    $region14: #{tpu_custom_call.1} parent=1 // pred_check
      _
    $region15: #{tpu_custom_call.1} parent=1 // pred_check_branch
      %136 = sbr.rel (0) target = $region17
    $region16: #{tpu_custom_call.1} parent=1 // pred_region
      %s138 = ssub.s32 512, 512
      %139 = vsyncadd [#allocation3], %s138
      %s140 = sshll.u32 [#allocation2], 4
      %s141 = int_to_ptr.vmem [resolvable:$true] %s140
      %146 = dma.vmem_to_hbm [thread:$0]  %s141, 512, %s3, [#allocation3], 128, 128, 8
    $region17: #{tpu_custom_call.1} parent=1 // pred_fallthru
      _
    // Predicated region
    $region18: #{tpu_custom_call.1} parent=1 // pred_check
      _
    $region19: #{tpu_custom_call.1} parent=1 // pred_check_branch
      %148 = sbr.rel (0) target = $region21
    $region20: #{tpu_custom_call.1} parent=1 // pred_region
      %149 = dma.done [#allocation3], 512
    $region21: #{tpu_custom_call.1} parent=1 // pred_fallthru
      _
    %150 = vsyncpa [#allocation3], 1

</llo_original>
